<compile_context>
chip_gen: v7x
topology: tpu7x:2x2x1
jax: 0.10.0
libtpu: 0.0.40
codegen_flags: <defaults>
</compile_context>

<pallas_src>
import jax
import jax.numpy as jnp
from jax.experimental import pallas as pl
from jax.experimental.pallas import tpu as pltpu


EPS = 1e-5
NEG_SLOPE = 0.01                  # nn.LeakyReLU default
VMEM_LIMIT = 32 * 1024 * 1024     # tiles are KB-scale; well under every chip


# --------------------------------------------------------------------------
# Single fused kernel.  Grid over batch ("arbitrary"); output block is the
# full (N, 4*Cq, HW) array and stays resident in VMEM across all grid steps.
# --------------------------------------------------------------------------
def _pyramid_kernel(patch_ref, w123_ref, b123_ref,
                    g2_ref, be2_ref, g3_ref, be3_ref,
                    w4_ref, b4_ref, out_ref):
    n = pl.program_id(0)
    nb = pl.num_programs(0)
    K, HW = patch_ref.shape[1], patch_ref.shape[2]
    Cq, Cin = w4_ref.shape

    patch = patch_ref[0]                                       # (K, HW) bf16

    # ---- branches 1/2/3 fused: ONE MXU contraction, M = 3*Cq --------------
    # Columns of w123 are laid out tap-major ((dh*5+dw)*Cin + c), matching the
    # patch rows, so rows 0:Cq are the 1x1 conv, Cq:2Cq the 3x3, 2Cq:3Cq the 5x5.
    y123 = jnp.dot(w123_ref[...], patch,
                   preferred_element_type=jnp.float32) + b123_ref[...]

    # ---- branch 4: global avg pool -> 1x1 conv -> broadcast ----------------
    # The center-tap rows of the 5x5 patch are exactly x, so no extra x read.
    center = (K - Cin) // 2
    xc = patch[center:center + Cin, :].astype(jnp.float32)     # (Cin, HW)
    pooled = jnp.mean(xc, axis=1, keepdims=True)               # (Cin, 1)
    y4 = jnp.dot(w4_ref[...], pooled,
                 preferred_element_type=jnp.float32) + b4_ref[...]   # (Cq, 1)
    y4b = jnp.broadcast_to(y4, (Cq, HW))

    # One unmasked full-row store of this sample's (4*Cq, HW) slab into the
    # batch-resident output block (channels Cq:3Cq hold raw pre-BN values).
    out_ref[n] = jnp.concatenate([y123, y4b], axis=0)

    # ---- last step: global BatchNorm (over N,H,W) + LeakyReLU, in place ----
    @pl.when(n == nb - 1)
    def _():
        def bn_leaky(c0, g_ref, be_ref):
            y = out_ref[:, c0:c0 + Cq, :]                      # (N, Cq, HW) f32
            m = jnp.mean(y, axis=(0, 2), keepdims=True)
            # centered (two-pass) biased variance -- training-mode BN
            v = jnp.mean((y - m) * (y - m), axis=(0, 2), keepdims=True)
            scale = g_ref[...][None] * jax.lax.rsqrt(v + EPS)  # (1, Cq, 1)
            shift = be_ref[...][None] - m * scale
            z = y * scale + shift
            out_ref[:, c0:c0 + Cq, :] = jnp.where(z >= 0, z, NEG_SLOPE * z)

        bn_leaky(Cq, g2_ref, be2_ref)
        bn_leaky(2 * Cq, g3_ref, be3_ref)


# --------------------------------------------------------------------------
# Wrapper: layout glue (lane-dense im2col, stacked weights) + one pallas_call.
# --------------------------------------------------------------------------
@jax.jit
def pyramid_module_pallas(x_nchw, params):
    """x_nchw: (N, Cin, H, W) float32. Returns (N, 4*Cq, H, W) float32."""
    (w1, b1, w2, b2, g2, be2, w3, b3, g3, be3, w4, b4) = params
    N, Cin, H, W = x_nchw.shape
    Cq = w1.shape[0]
    HW = H * W
    K = 25 * Cin

    # ---- lane-dense im2col in the wrapper (HW = 256 on the lane axis) ------
    xp = jnp.pad(x_nchw, ((0, 0), (0, 0), (2, 2), (2, 2)))     # pad 2 (5x5)
    taps = [xp[:, :, dh:dh + H, dw:dw + W]
            for dh in range(5) for dw in range(5)]             # 25 x (N,Cin,H,W)
    patch = (jnp.concatenate(taps, axis=1)                     # (N, 25*Cin, H, W)
             .reshape(N, K, HW).astype(jnp.bfloat16))

    # ---- stacked conv weights: embed 1x1 / 3x3 into the 5x5 tap layout -----
    w1_5 = jnp.pad(w1, ((0, 0), (0, 0), (2, 2), (2, 2)))
    w2_5 = jnp.pad(w2, ((0, 0), (0, 0), (1, 1), (1, 1)))

    def flat(w):  # (Cq, Cin, 5, 5) -> (Cq, 25*Cin), tap-major / channel-minor
        return jnp.transpose(w, (0, 2, 3, 1)).reshape(Cq, K)

    w123 = jnp.concatenate([flat(w1_5), flat(w2_5), flat(w3)],
                           axis=0).astype(jnp.bfloat16)        # (3*Cq, K)
    b123 = jnp.concatenate([b1, b2, b3]).reshape(3 * Cq, 1).astype(jnp.float32)
    col = lambda v: v.reshape(-1, 1).astype(jnp.float32)       # (Cq, 1)
    w4t = w4[:, :, 0, 0].astype(jnp.float32)                   # (Cq, Cin)

    out_flat = pl.pallas_call(
        _pyramid_kernel,
        grid=(N,),
        in_specs=[
            pl.BlockSpec((1, K, HW), lambda n: (n, 0, 0)),     # patch (per sample)
            pl.BlockSpec((3 * Cq, K), lambda n: (0, 0)),       # stacked weights
            pl.BlockSpec((3 * Cq, 1), lambda n: (0, 0)),       # stacked biases
            pl.BlockSpec((Cq, 1), lambda n: (0, 0)),           # gamma2
            pl.BlockSpec((Cq, 1), lambda n: (0, 0)),           # beta2
            pl.BlockSpec((Cq, 1), lambda n: (0, 0)),           # gamma3
            pl.BlockSpec((Cq, 1), lambda n: (0, 0)),           # beta3
            pl.BlockSpec((Cq, Cin), lambda n: (0, 0)),         # w4
            pl.BlockSpec((Cq, 1), lambda n: (0, 0)),           # b4
        ],
        # Constant block index -> full output stays resident in VMEM across the
        # batch loop and is written back to HBM exactly once.
        out_specs=pl.BlockSpec((N, 4 * Cq, HW), lambda n: (0, 0, 0)),
        out_shape=jax.ShapeDtypeStruct((N, 4 * Cq, HW), jnp.float32),
        compiler_params=pltpu.CompilerParams(
            dimension_semantics=("arbitrary",),   # BN accumulates across batch
            vmem_limit_bytes=VMEM_LIMIT),
    )(patch, w123, b123, col(g2), col(be2), col(g3), col(be3), w4t, col(b4))

    # (N, 4*Cq, H*W) is already NCHW; just un-flatten the spatial axis.
    return out_flat.reshape(N, 4 * Cq, H, W)


# ----------------------------- reference (plain JAX, for verification) -----
def _ref_forward(x, params):
    (w1, b1, w2, b2, g2, be2, w3, b3, g3, be3, w4, b4) = params

    def conv(inp, w, b, pad):
        y = jax.lax.conv_general_dilated(
            inp, w, window_strides=(1, 1),
            padding=((pad, pad), (pad, pad)),
            dimension_numbers=('NCHW', 'OIHW', 'NCHW'))
        return y + b[None, :, None, None]

    def bn_leaky(y, g, be):
        mean = y.mean(axis=(0, 2, 3), keepdims=True)
        var = ((y - mean) ** 2).mean(axis=(0, 2, 3), keepdims=True)
        yn = (y - mean) / jnp.sqrt(var + EPS)
        yn = yn * g[None, :, None, None] + be[None, :, None, None]
        return jnp.where(yn >= 0, yn, NEG_SLOPE * yn)

    out1 = conv(x, w1, b1, 0)
    out2 = bn_leaky(conv(x, w2, b2, 1), g2, be2)
    out3 = bn_leaky(conv(x, w3, b3, 2), g3, be3)
    pooled = x.mean(axis=(2, 3), keepdims=True)
    y4 = conv(pooled, w4, b4, 0)
    out4 = jnp.broadcast_to(y4, (x.shape[0], w4.shape[0],
                                 x.shape[2], x.shape[3]))
    return jnp.concatenate([out1, out2, out3, out4], axis=1)


def _init_params(key, in_channels, out_channels):
    Cq = out_channels // 4
    ks = jax.random.split(key, 12)
    nrm = lambda k, s: (0.1 * jax.random.normal(k, s)).astype(jnp.float32)
    w1 = nrm(ks[0], (Cq, in_channels, 1, 1)); b1 = nrm(ks[1], (Cq,))
    w2 = nrm(ks[2], (Cq, in_channels, 3, 3)); b2 = nrm(ks[3], (Cq,))
    g2 = 1.0 + nrm(ks[4], (Cq,));             be2 = nrm(ks[5], (Cq,))
    w3 = nrm(ks[6], (Cq, in_channels, 5, 5)); b3 = nrm(ks[7], (Cq,))
    g3 = 1.0 + nrm(ks[8], (Cq,));             be3 = nrm(ks[9], (Cq,))
    w4 = nrm(ks[10], (Cq, in_channels, 1, 1)); b4 = nrm(ks[11], (Cq,))
    return (w1, b1, w2, b2, g2, be2, w3, b3, g3, be3, w4, b4)


if __name__ == "__main__":
    key = jax.random.PRNGKey(0)
    k_x, k_p = jax.random.split(key)

    N, Cin, H, W = 2, 4, 16, 16
    out_channels = 16
    x = jax.random.normal(k_x, (N, Cin, H, W), dtype=jnp.float32)
    params = _init_params(k_p, Cin, out_channels)

    out = jax.block_until_ready(pyramid_module_pallas(x, params))
    ref = jax.block_until_ready(_ref_forward(x, params))

    assert out.shape == (N, out_channels, H, W), out.shape
    # Tolerance sized for bf16 MXU operands (f32 accumulation everywhere).
    max_err = float(jnp.max(jnp.abs(out - ref)))
    assert jnp.allclose(out, ref, atol=2e-2, rtol=2e-2), max_err
    print("KERNEL_OK")
</pallas_src>

<mosaic_0001>
module attributes {stable_mosaic.version = 11 : i64} {
  func.func @_pyramid_kernel(%arg0: i32, %arg1: memref<1x100x256xbf16, #tpu.memory_space<vmem>>, %arg2: memref<12x100xbf16, #tpu.memory_space<vmem>>, %arg3: memref<12x1xf32, #tpu.memory_space<vmem>>, %arg4: memref<4x1xf32, #tpu.memory_space<vmem>>, %arg5: memref<4x1xf32, #tpu.memory_space<vmem>>, %arg6: memref<4x1xf32, #tpu.memory_space<vmem>>, %arg7: memref<4x1xf32, #tpu.memory_space<vmem>>, %arg8: memref<4x4xf32, #tpu.memory_space<vmem>>, %arg9: memref<4x1xf32, #tpu.memory_space<vmem>>, %arg10: memref<2x16x256xf32, #tpu.memory_space<vmem>>) attributes {dimension_semantics = [#tpu.dimension_semantics<arbitrary>], iteration_bounds = array<i64: 2>, scalar_prefetch = 0 : i64, scratch_operands = 0 : i64, tpu.core_type = #tpu.core_type<tc>, window_params = [{transform_indices = @transform_0, window_bounds = array<i64: 1, 100, 256>}, {pipeline_mode = #tpu.pipeline_mode<synchronous>, transform_indices = @transform_1, window_bounds = array<i64: 12, 100>}, {pipeline_mode = #tpu.pipeline_mode<synchronous>, transform_indices = @transform_2, window_bounds = array<i64: 12, 1>}, {pipeline_mode = #tpu.pipeline_mode<synchronous>, transform_indices = @transform_3, window_bounds = array<i64: 4, 1>}, {pipeline_mode = #tpu.pipeline_mode<synchronous>, transform_indices = @transform_4, window_bounds = array<i64: 4, 1>}, {pipeline_mode = #tpu.pipeline_mode<synchronous>, transform_indices = @transform_5, window_bounds = array<i64: 4, 1>}, {pipeline_mode = #tpu.pipeline_mode<synchronous>, transform_indices = @transform_6, window_bounds = array<i64: 4, 1>}, {pipeline_mode = #tpu.pipeline_mode<synchronous>, transform_indices = @transform_7, window_bounds = array<i64: 4, 4>}, {pipeline_mode = #tpu.pipeline_mode<synchronous>, transform_indices = @transform_8, window_bounds = array<i64: 4, 1>}, {pipeline_mode = #tpu.pipeline_mode<synchronous>, transform_indices = @transform_9, window_bounds = array<i64: 2, 16, 256>}]} {
    %c0 = arith.constant 0 : index
    %c0_0 = arith.constant 0 : index
    %c0_1 = arith.constant 0 : index
    %0 = vector.load %arg1[%c0, %c0_0, %c0_1] : memref<1x100x256xbf16, #tpu.memory_space<vmem>>, vector<1x100x256xbf16>
    %1 = vector.shape_cast %0 : vector<1x100x256xbf16> to vector<100x256xbf16>
    %c0_2 = arith.constant 0 : index
    %c0_3 = arith.constant 0 : index
    %2 = vector.load %arg2[%c0_2, %c0_3] : memref<12x100xbf16, #tpu.memory_space<vmem>>, vector<12x100xbf16>
    %cst = arith.constant dense<0.000000e+00> : vector<12x256xf32>
    %3 = tpu.matmul %2, %1, %cst {dimension_numbers = #tpu.dot_dimension_numbers<[1], [0], [0], [1], [0, 0, 1, 1], [], []>} : vector<12x100xbf16>, vector<100x256xbf16>, vector<12x256xf32> -> vector<12x256xf32>
    %c0_4 = arith.constant 0 : index
    %c0_5 = arith.constant 0 : index
    %4 = vector.load %arg3[%c0_4, %c0_5] : memref<12x1xf32, #tpu.memory_space<vmem>>, vector<12x1xf32>
    %5 = vector.broadcast %4 : vector<12x1xf32> to vector<12x256xf32>
    %6 = arith.addf %3, %5 : vector<12x256xf32>
    %7 = vector.extract_strided_slice %1 {offsets = [48, 0], sizes = [4, 256], strides = [1, 1]} : vector<100x256xbf16> to vector<4x256xbf16>
    %8 = arith.extf %7 : vector<4x256xbf16> to vector<4x256xf32>
    %cst_6 = arith.constant dense<0.000000e+00> : vector<4xf32>
    %9 = vector.multi_reduction <add>, %8, %cst_6 [1] : vector<4x256xf32> to vector<4xf32>
    %10 = vector.shape_cast %9 : vector<4xf32> to vector<4x1xf32>
    %cst_7 = arith.constant 2.560000e+02 : f32
    %11 = vector.broadcast %cst_7 : f32 to vector<4x1xf32>
    %12 = arith.divf %10, %11 : vector<4x1xf32>
    %c0_8 = arith.constant 0 : index
    %c0_9 = arith.constant 0 : index
    %13 = vector.load %arg8[%c0_8, %c0_9] : memref<4x4xf32, #tpu.memory_space<vmem>>, vector<4x4xf32>
    %cst_10 = arith.constant dense<0.000000e+00> : vector<4x1xf32>
    %14 = tpu.matmul %13, %12, %cst_10 {dimension_numbers = #tpu.dot_dimension_numbers<[1], [0], [0], [1], [0, 0, 1, 1], [], []>} : vector<4x4xf32>, vector<4x1xf32>, vector<4x1xf32> -> vector<4x1xf32>
    %c0_11 = arith.constant 0 : index
    %c0_12 = arith.constant 0 : index
    %15 = vector.load %arg9[%c0_11, %c0_12] : memref<4x1xf32, #tpu.memory_space<vmem>>, vector<4x1xf32>
    %16 = arith.addf %14, %15 : vector<4x1xf32>
    %17 = vector.shape_cast %16 : vector<4x1xf32> to vector<4x1xf32>
    %18 = vector.broadcast %17 : vector<4x1xf32> to vector<4x256xf32>
    %19 = tpu.concatenate %6, %18 in 0 : vector<12x256xf32>, vector<4x256xf32> -> vector<16x256xf32>
    %20 = arith.index_cast %arg0 : i32 to index
    %c0_13 = arith.constant 0 : index
    %c0_14 = arith.constant 0 : index
    %21 = vector.load %arg10[%20, %c0_13, %c0_14] : memref<2x16x256xf32, #tpu.memory_space<vmem>>, vector<1x16x256xf32>
    %22 = vector.shape_cast %21 : vector<1x16x256xf32> to vector<16x256xf32>
    %23 = vector.shape_cast %19 : vector<16x256xf32> to vector<1x16x256xf32>
    tpu.vector_store %arg10[%20, %c0_13, %c0_14], %23 {strides = array<i32>} : memref<2x16x256xf32, #tpu.memory_space<vmem>>, vector<1x16x256xf32>,
    %c1_i32 = arith.constant 1 : i32
    %24 = arith.cmpi eq, %arg0, %c1_i32 : i32
    %25 = arith.extui %24 : i1 to i32
    %c0_i32 = arith.constant 0 : i32
    %26 = arith.cmpi ne, %25, %c0_i32 : i32
    scf.if %26 {
      %c0_15 = arith.constant 0 : index
      %c4 = arith.constant 4 : index
      %c0_16 = arith.constant 0 : index
      %27 = vector.load %arg10[%c0_15, %c4, %c0_16] : memref<2x16x256xf32, #tpu.memory_space<vmem>>, vector<2x4x256xf32>
      %cst_17 = arith.constant dense<0.000000e+00> : vector<4xf32>
      %28 = vector.multi_reduction <add>, %27, %cst_17 [0, 2] : vector<2x4x256xf32> to vector<4xf32>
      %29 = vector.shape_cast %28 : vector<4xf32> to vector<1x4x1xf32>
      %cst_18 = arith.constant 5.120000e+02 : f32
      %30 = vector.broadcast %cst_18 : f32 to vector<1x4x1xf32>
      %31 = arith.divf %29, %30 : vector<1x4x1xf32>
      %32 = vector.broadcast %31 : vector<1x4x1xf32> to vector<2x4x256xf32>
      %33 = arith.subf %27, %32 : vector<2x4x256xf32>
      %34 = vector.broadcast %31 : vector<1x4x1xf32> to vector<2x4x256xf32>
      %35 = arith.subf %27, %34 : vector<2x4x256xf32>
      %36 = arith.mulf %33, %35 : vector<2x4x256xf32>
      %cst_19 = arith.constant dense<0.000000e+00> : vector<4xf32>
      %37 = vector.multi_reduction <add>, %36, %cst_19 [0, 2] : vector<2x4x256xf32> to vector<4xf32>
      %38 = vector.shape_cast %37 : vector<4xf32> to vector<1x4x1xf32>
      %cst_20 = arith.constant 5.120000e+02 : f32
      %39 = vector.broadcast %cst_20 : f32 to vector<1x4x1xf32>
      %40 = arith.divf %38, %39 : vector<1x4x1xf32>
      %c0_21 = arith.constant 0 : index
      %c0_22 = arith.constant 0 : index
      %41 = vector.load %arg4[%c0_21, %c0_22] : memref<4x1xf32, #tpu.memory_space<vmem>>, vector<4x1xf32>
      %42 = vector.shape_cast %41 : vector<4x1xf32> to vector<1x4x1xf32>
      %cst_23 = arith.constant 9.99999974E-6 : f32
      %43 = vector.broadcast %cst_23 : f32 to vector<1x4x1xf32>
      %44 = arith.addf %40, %43 : vector<1x4x1xf32>
      %45 = math.rsqrt %44 : vector<1x4x1xf32>
      %46 = arith.mulf %42, %45 : vector<1x4x1xf32>
      %c0_24 = arith.constant 0 : index
      %c0_25 = arith.constant 0 : index
      %47 = vector.load %arg5[%c0_24, %c0_25] : memref<4x1xf32, #tpu.memory_space<vmem>>, vector<4x1xf32>
      %48 = vector.shape_cast %47 : vector<4x1xf32> to vector<1x4x1xf32>
      %49 = arith.mulf %31, %46 : vector<1x4x1xf32>
      %50 = arith.subf %48, %49 : vector<1x4x1xf32>
      %51 = vector.broadcast %46 : vector<1x4x1xf32> to vector<2x4x256xf32>
      %52 = arith.mulf %27, %51 : vector<2x4x256xf32>
      %53 = vector.broadcast %50 : vector<1x4x1xf32> to vector<2x4x256xf32>
      %54 = arith.addf %52, %53 : vector<2x4x256xf32>
      %cst_26 = arith.constant 0.000000e+00 : f32
      %55 = vector.broadcast %cst_26 : f32 to vector<2x4x256xf32>
      %56 = arith.cmpf oge, %54, %55 : vector<2x4x256xf32>
      %cst_27 = arith.constant 0.00999999977 : f32
      %57 = vector.broadcast %cst_27 : f32 to vector<2x4x256xf32>
      %58 = arith.mulf %57, %54 : vector<2x4x256xf32>
      %59 = arith.select %56, %54, %58 : vector<2x4x256xi1>, vector<2x4x256xf32>
      %c0_28 = arith.constant 0 : index
      %c4_29 = arith.constant 4 : index
      %c0_30 = arith.constant 0 : index
      %60 = vector.load %arg10[%c0_28, %c4_29, %c0_30] : memref<2x16x256xf32, #tpu.memory_space<vmem>>, vector<2x4x256xf32>
      tpu.vector_store %arg10[%c0_28, %c4_29, %c0_30], %59 {strides = array<i32>} : memref<2x16x256xf32, #tpu.memory_space<vmem>>, vector<2x4x256xf32>,
      %c0_31 = arith.constant 0 : index
      %c8 = arith.constant 8 : index
      %c0_32 = arith.constant 0 : index
      %61 = vector.load %arg10[%c0_31, %c8, %c0_32] : memref<2x16x256xf32, #tpu.memory_space<vmem>>, vector<2x4x256xf32>
      %cst_33 = arith.constant dense<0.000000e+00> : vector<4xf32>
      %62 = vector.multi_reduction <add>, %61, %cst_33 [0, 2] : vector<2x4x256xf32> to vector<4xf32>
      %63 = vector.shape_cast %62 : vector<4xf32> to vector<1x4x1xf32>
      %cst_34 = arith.constant 5.120000e+02 : f32
      %64 = vector.broadcast %cst_34 : f32 to vector<1x4x1xf32>
      %65 = arith.divf %63, %64 : vector<1x4x1xf32>
      %66 = vector.broadcast %65 : vector<1x4x1xf32> to vector<2x4x256xf32>
      %67 = arith.subf %61, %66 : vector<2x4x256xf32>
      %68 = vector.broadcast %65 : vector<1x4x1xf32> to vector<2x4x256xf32>
      %69 = arith.subf %61, %68 : vector<2x4x256xf32>
      %70 = arith.mulf %67, %69 : vector<2x4x256xf32>
      %cst_35 = arith.constant dense<0.000000e+00> : vector<4xf32>
      %71 = vector.multi_reduction <add>, %70, %cst_35 [0, 2] : vector<2x4x256xf32> to vector<4xf32>
      %72 = vector.shape_cast %71 : vector<4xf32> to vector<1x4x1xf32>
      %cst_36 = arith.constant 5.120000e+02 : f32
      %73 = vector.broadcast %cst_36 : f32 to vector<1x4x1xf32>
      %74 = arith.divf %72, %73 : vector<1x4x1xf32>
      %c0_37 = arith.constant 0 : index
      %c0_38 = arith.constant 0 : index
      %75 = vector.load %arg6[%c0_37, %c0_38] : memref<4x1xf32, #tpu.memory_space<vmem>>, vector<4x1xf32>
      %76 = vector.shape_cast %75 : vector<4x1xf32> to vector<1x4x1xf32>
      %cst_39 = arith.constant 9.99999974E-6 : f32
      %77 = vector.broadcast %cst_39 : f32 to vector<1x4x1xf32>
      %78 = arith.addf %74, %77 : vector<1x4x1xf32>
      %79 = math.rsqrt %78 : vector<1x4x1xf32>
      %80 = arith.mulf %76, %79 : vector<1x4x1xf32>
      %c0_40 = arith.constant 0 : index
      %c0_41 = arith.constant 0 : index
      %81 = vector.load %arg7[%c0_40, %c0_41] : memref<4x1xf32, #tpu.memory_space<vmem>>, vector<4x1xf32>
      %82 = vector.shape_cast %81 : vector<4x1xf32> to vector<1x4x1xf32>
      %83 = arith.mulf %65, %80 : vector<1x4x1xf32>
      %84 = arith.subf %82, %83 : vector<1x4x1xf32>
      %85 = vector.broadcast %80 : vector<1x4x1xf32> to vector<2x4x256xf32>
      %86 = arith.mulf %61, %85 : vector<2x4x256xf32>
      %87 = vector.broadcast %84 : vector<1x4x1xf32> to vector<2x4x256xf32>
      %88 = arith.addf %86, %87 : vector<2x4x256xf32>
      %cst_42 = arith.constant 0.000000e+00 : f32
      %89 = vector.broadcast %cst_42 : f32 to vector<2x4x256xf32>
      %90 = arith.cmpf oge, %88, %89 : vector<2x4x256xf32>
      %cst_43 = arith.constant 0.00999999977 : f32
      %91 = vector.broadcast %cst_43 : f32 to vector<2x4x256xf32>
      %92 = arith.mulf %91, %88 : vector<2x4x256xf32>
      %93 = arith.select %90, %88, %92 : vector<2x4x256xi1>, vector<2x4x256xf32>
      %c0_44 = arith.constant 0 : index
      %c8_45 = arith.constant 8 : index
      %c0_46 = arith.constant 0 : index
      %94 = vector.load %arg10[%c0_44, %c8_45, %c0_46] : memref<2x16x256xf32, #tpu.memory_space<vmem>>, vector<2x4x256xf32>
      tpu.vector_store %arg10[%c0_44, %c8_45, %c0_46], %93 {strides = array<i32>} : memref<2x16x256xf32, #tpu.memory_space<vmem>>, vector<2x4x256xf32>,
    } else {
    }
    return
  }
  func.func @transform_0(%arg0: i32) -> (i32, i32, i32) {
    %c0_i32 = arith.constant 0 : i32
    %c0_i32_0 = arith.constant 0 : i32
    %c0_i32_1 = arith.constant 0 : i32
    return %arg0, %c0_i32, %c0_i32_0 : i32, i32, i32
  }
  func.func @transform_1(%arg0: i32) -> (i32, i32) {
    %c0_i32 = arith.constant 0 : i32
    %c0_i32_0 = arith.constant 0 : i32
    %c0_i32_1 = arith.constant 0 : i32
    return %c0_i32, %c0_i32_0 : i32, i32
  }
  func.func @transform_2(%arg0: i32) -> (i32, i32) {
    %c0_i32 = arith.constant 0 : i32
    %c0_i32_0 = arith.constant 0 : i32
    %c0_i32_1 = arith.constant 0 : i32
    return %c0_i32, %c0_i32_0 : i32, i32
  }
  func.func @transform_3(%arg0: i32) -> (i32, i32) {
    %c0_i32 = arith.constant 0 : i32
    %c0_i32_0 = arith.constant 0 : i32
    %c0_i32_1 = arith.constant 0 : i32
    return %c0_i32, %c0_i32_0 : i32, i32
  }
  func.func @transform_4(%arg0: i32) -> (i32, i32) {
    %c0_i32 = arith.constant 0 : i32
    %c0_i32_0 = arith.constant 0 : i32
    %c0_i32_1 = arith.constant 0 : i32
    return %c0_i32, %c0_i32_0 : i32, i32
  }
  func.func @transform_5(%arg0: i32) -> (i32, i32) {
    %c0_i32 = arith.constant 0 : i32
    %c0_i32_0 = arith.constant 0 : i32
    %c0_i32_1 = arith.constant 0 : i32
    return %c0_i32, %c0_i32_0 : i32, i32
  }
  func.func @transform_6(%arg0: i32) -> (i32, i32) {
    %c0_i32 = arith.constant 0 : i32
    %c0_i32_0 = arith.constant 0 : i32
    %c0_i32_1 = arith.constant 0 : i32
    return %c0_i32, %c0_i32_0 : i32, i32
  }
  func.func @transform_7(%arg0: i32) -> (i32, i32) {
    %c0_i32 = arith.constant 0 : i32
    %c0_i32_0 = arith.constant 0 : i32
    %c0_i32_1 = arith.constant 0 : i32
    return %c0_i32, %c0_i32_0 : i32, i32
  }
  func.func @transform_8(%arg0: i32) -> (i32, i32) {
    %c0_i32 = arith.constant 0 : i32
    %c0_i32_0 = arith.constant 0 : i32
    %c0_i32_1 = arith.constant 0 : i32
    return %c0_i32, %c0_i32_0 : i32, i32
  }
  func.func @transform_9(%arg0: i32) -> (i32, i32, i32) {
    %c0_i32 = arith.constant 0 : i32
    %c0_i32_0 = arith.constant 0 : i32
    %c0_i32_1 = arith.constant 0 : i32
    %c0_i32_2 = arith.constant 0 : i32
    return %c0_i32, %c0_i32_0, %c0_i32_1 : i32, i32, i32
  }
}

</mosaic_0001>

<llo_original>
// kernel: pyramid_module_pallas.1
$region0: #{pyramid_module_pallas.1}
  #allocation0 [shape = 'u32[]', space=smem, size = 0x4, offset = 0x4, fixed_abs, tag = 'smem constant byte address 0x4 - core index']
  #allocation1 [shape = 'u32[144,128]{1,0:T(1,128)}', space=vmem, size = 0x12000, scoped, tag = 'internal scratch']
  %s0 = inlined_call_operand.vmem [shape: bf16[2,100,256], index: 0, kind: input, shape index: {}]
  %s1 = inlined_call_operand.vmem [shape: bf16[12,100], index: 1, kind: input, shape index: {}]
  %s2 = inlined_call_operand.vmem [shape: f32[12,1], index: 2, kind: input, shape index: {}]
  %s3 = inlined_call_operand.vmem [shape: f32[4,1], index: 3, kind: input, shape index: {}]
  %s4 = inlined_call_operand.vmem [shape: f32[4,1], index: 4, kind: input, shape index: {}]
  %s5 = inlined_call_operand.vmem [shape: f32[4,1], index: 5, kind: input, shape index: {}]
  %s6 = inlined_call_operand.vmem [shape: f32[4,1], index: 6, kind: input, shape index: {}]
  %s7 = inlined_call_operand.vmem [shape: f32[4,4], index: 7, kind: input, shape index: {}]
  %s8 = inlined_call_operand.vmem [shape: f32[4,1], index: 8, kind: input, shape index: {}]
  %s9 = inlined_call_operand.vmem [shape: f32[2,16,256], index: 9, kind: output, shape index: {}]
  %s10 = sld [smem:[#allocation0]]
  $region73: #{pyramid_module_pallas.1} parent=0
    _
  %s12 = ssub.s32 1, %s10
  %s13 = scalar_select 0, %s12, %s10
  loop: start=0, step=1, limit=4
  $region2: #{pyramid_module_pallas.1} parent=0 // loop_pre_header
    _
  $region3: #{pyramid_module_pallas.1} parent=0 // loop_header
    %s15 = sphi 0, %s19
    %p16 = scmp.ge.s32.totalorder %s15, 4
    %s25 = sphi 0, %s27
    %s28 = sphi 0, %s25
    %s29 = sphi 0, %s28
    %s45 = sphi 0, %s29
    %s49 = sphi 0, %s49
    %s51 = sphi 0, %s49
    %s52 = sphi 0, %s51
    %s66 = sphi 0, %s52
    %s70 = sphi 0, %s70
    %s72 = sphi 0, %s70
    %s73 = sphi 0, %s72
    %s87 = sphi 0, %s73
    %s91 = sphi 0, %s91
    %s93 = sphi 0, %s91
    %s94 = sphi 0, %s93
    %s108 = sphi 0, %s94
    %s112 = sphi 0, %s112
    %s114 = sphi 0, %s112
    %s115 = sphi 0, %s114
    %s129 = sphi 0, %s115
    %s133 = sphi 0, %s133
    %s135 = sphi 0, %s133
    %s136 = sphi 0, %s135
    %s150 = sphi 0, %s136
    %s154 = sphi 0, %s154
    %s156 = sphi 0, %s154
    %s157 = sphi 0, %s156
    %s171 = sphi 0, %s157
    %s175 = sphi 0, %s175
    %s177 = sphi 0, %s175
    %s178 = sphi 0, %s177
    %s192 = sphi 0, %s178
    %s196 = sphi 0, %s196
    %s198 = sphi 0, %s196
    %s199 = sphi 0, %s198
    %s213 = sphi 0, %s199
    %s217 = sphi 0, %s217
    %s219 = sphi 0, %s217
    %s220 = sphi 0, %s219
    %s234 = sphi 0, %s220
  $region4: #{pyramid_module_pallas.1} parent=0 // loop_header_branch
    %18 = sbr.rel (%p16) target = $region8
  $region5: #{pyramid_module_pallas.1} parent=0 // loop_body
    %s20 = ssub.s32 %s15, 1
    %s21 = ssub.s32 %s15, 2
    %s22 = sadd.s32 %s15, 1
    %s23 = ssub.s32 %s15, %s22
    %p24 = scmp.eq.s32.totalorder %s23, 0
    %s26 = sadd.s32 %s25, 1
    %s27 = scalar_select %p24, %s25, %s26
    %p30 = pneg %p24
    %p31 = scmp.eq.s32.totalorder %s15, 1
    %p32 = por %p30, %p31
    %p33 = scmp.ne.s32.totalorder %s25, %s28
    %p34 = scmp.eq.s32.totalorder %s15, 0
    %p35 = por %p33, %p34
    %p36 = scmp.ne.s32.totalorder %s25, %s28
    %p37 = scmp.eq.s32.totalorder %s20, 1
    %p38 = por %p36, %p37
    %p39 = scmp.ne.s32.totalorder %s28, %s29
    %p40 = scmp.eq.s32.totalorder %s20, 0
    %p41 = por %p39, %p40
    %p42 = scmp.ne.s32.totalorder %s28, %s29
    %p43 = scmp.eq.s32.totalorder %s21, 1
    %p44 = por %p42, %p43
    %p46 = scmp.ne.s32.totalorder %s29, %s45
    %p47 = scmp.eq.s32.totalorder %s21, 0
    %p48 = por %p46, %p47
    %s50 = sadd.s32 %s49, 1
    %p53 = scmp.eq.s32.totalorder %s15, 1
    %p54 = scmp.ne.s32.totalorder %s49, %s51
    %p55 = scmp.eq.s32.totalorder %s15, 0
    %p56 = por %p54, %p55
    %p57 = scmp.ne.s32.totalorder %s49, %s51
    %p58 = scmp.eq.s32.totalorder %s20, 1
    %p59 = por %p57, %p58
    %p60 = scmp.ne.s32.totalorder %s51, %s52
    %p61 = scmp.eq.s32.totalorder %s20, 0
    %p62 = por %p60, %p61
    %p63 = scmp.ne.s32.totalorder %s51, %s52
    %p64 = scmp.eq.s32.totalorder %s21, 1
    %p65 = por %p63, %p64
    %p67 = scmp.ne.s32.totalorder %s52, %s66
    %p68 = scmp.eq.s32.totalorder %s21, 0
    %p69 = por %p67, %p68
    %s71 = sadd.s32 %s70, 1
    %p74 = scmp.eq.s32.totalorder %s15, 1
    %p75 = scmp.ne.s32.totalorder %s70, %s72
    %p76 = scmp.eq.s32.totalorder %s15, 0
    %p77 = por %p75, %p76
    %p78 = scmp.ne.s32.totalorder %s70, %s72
    %p79 = scmp.eq.s32.totalorder %s20, 1
    %p80 = por %p78, %p79
    %p81 = scmp.ne.s32.totalorder %s72, %s73
    %p82 = scmp.eq.s32.totalorder %s20, 0
    %p83 = por %p81, %p82
    %p84 = scmp.ne.s32.totalorder %s72, %s73
    %p85 = scmp.eq.s32.totalorder %s21, 1
    %p86 = por %p84, %p85
    %p88 = scmp.ne.s32.totalorder %s73, %s87
    %p89 = scmp.eq.s32.totalorder %s21, 0
    %p90 = por %p88, %p89
    %s92 = sadd.s32 %s91, 1
    %p95 = scmp.eq.s32.totalorder %s15, 1
    %p96 = scmp.ne.s32.totalorder %s91, %s93
    %p97 = scmp.eq.s32.totalorder %s15, 0
    %p98 = por %p96, %p97
    %p99 = scmp.ne.s32.totalorder %s91, %s93
    %p100 = scmp.eq.s32.totalorder %s20, 1
    %p101 = por %p99, %p100
    %p102 = scmp.ne.s32.totalorder %s93, %s94
    %p103 = scmp.eq.s32.totalorder %s20, 0
    %p104 = por %p102, %p103
    %p105 = scmp.ne.s32.totalorder %s93, %s94
    %p106 = scmp.eq.s32.totalorder %s21, 1
    %p107 = por %p105, %p106
    %p109 = scmp.ne.s32.totalorder %s94, %s108
    %p110 = scmp.eq.s32.totalorder %s21, 0
    %p111 = por %p109, %p110
    %s113 = sadd.s32 %s112, 1
    %p116 = scmp.eq.s32.totalorder %s15, 1
    %p117 = scmp.ne.s32.totalorder %s112, %s114
    %p118 = scmp.eq.s32.totalorder %s15, 0
    %p119 = por %p117, %p118
    %p120 = scmp.ne.s32.totalorder %s112, %s114
    %p121 = scmp.eq.s32.totalorder %s20, 1
    %p122 = por %p120, %p121
    %p123 = scmp.ne.s32.totalorder %s114, %s115
    %p124 = scmp.eq.s32.totalorder %s20, 0
    %p125 = por %p123, %p124
    %p126 = scmp.ne.s32.totalorder %s114, %s115
    %p127 = scmp.eq.s32.totalorder %s21, 1
    %p128 = por %p126, %p127
    %p130 = scmp.ne.s32.totalorder %s115, %s129
    %p131 = scmp.eq.s32.totalorder %s21, 0
    %p132 = por %p130, %p131
    %s134 = sadd.s32 %s133, 1
    %p137 = scmp.eq.s32.totalorder %s15, 1
    %p138 = scmp.ne.s32.totalorder %s133, %s135
    %p139 = scmp.eq.s32.totalorder %s15, 0
    %p140 = por %p138, %p139
    %p141 = scmp.ne.s32.totalorder %s133, %s135
    %p142 = scmp.eq.s32.totalorder %s20, 1
    %p143 = por %p141, %p142
    %p144 = scmp.ne.s32.totalorder %s135, %s136
    %p145 = scmp.eq.s32.totalorder %s20, 0
    %p146 = por %p144, %p145
    %p147 = scmp.ne.s32.totalorder %s135, %s136
    %p148 = scmp.eq.s32.totalorder %s21, 1
    %p149 = por %p147, %p148
    %p151 = scmp.ne.s32.totalorder %s136, %s150
    %p152 = scmp.eq.s32.totalorder %s21, 0
    %p153 = por %p151, %p152
    %s155 = sadd.s32 %s154, 1
    %p158 = scmp.eq.s32.totalorder %s15, 1
    %p159 = scmp.ne.s32.totalorder %s154, %s156
    %p160 = scmp.eq.s32.totalorder %s15, 0
    %p161 = por %p159, %p160
    %p162 = scmp.ne.s32.totalorder %s154, %s156
    %p163 = scmp.eq.s32.totalorder %s20, 1
    %p164 = por %p162, %p163
    %p165 = scmp.ne.s32.totalorder %s156, %s157
    %p166 = scmp.eq.s32.totalorder %s20, 0
    %p167 = por %p165, %p166
    %p168 = scmp.ne.s32.totalorder %s156, %s157
    %p169 = scmp.eq.s32.totalorder %s21, 1
    %p170 = por %p168, %p169
    %p172 = scmp.ne.s32.totalorder %s157, %s171
    %p173 = scmp.eq.s32.totalorder %s21, 0
    %p174 = por %p172, %p173
    %s176 = sadd.s32 %s175, 1
    %p179 = scmp.eq.s32.totalorder %s15, 1
    %p180 = scmp.ne.s32.totalorder %s175, %s177
    %p181 = scmp.eq.s32.totalorder %s15, 0
    %p182 = por %p180, %p181
    %p183 = scmp.ne.s32.totalorder %s175, %s177
    %p184 = scmp.eq.s32.totalorder %s20, 1
    %p185 = por %p183, %p184
    %p186 = scmp.ne.s32.totalorder %s177, %s178
    %p187 = scmp.eq.s32.totalorder %s20, 0
    %p188 = por %p186, %p187
    %p189 = scmp.ne.s32.totalorder %s177, %s178
    %p190 = scmp.eq.s32.totalorder %s21, 1
    %p191 = por %p189, %p190
    %p193 = scmp.ne.s32.totalorder %s178, %s192
    %p194 = scmp.eq.s32.totalorder %s21, 0
    %p195 = por %p193, %p194
    %s197 = sadd.s32 %s196, 1
    %p200 = scmp.eq.s32.totalorder %s15, 1
    %p201 = scmp.ne.s32.totalorder %s196, %s198
    %p202 = scmp.eq.s32.totalorder %s15, 0
    %p203 = por %p201, %p202
    %p204 = scmp.ne.s32.totalorder %s196, %s198
    %p205 = scmp.eq.s32.totalorder %s20, 1
    %p206 = por %p204, %p205
    %p207 = scmp.ne.s32.totalorder %s198, %s199
    %p208 = scmp.eq.s32.totalorder %s20, 0
    %p209 = por %p207, %p208
    %p210 = scmp.ne.s32.totalorder %s198, %s199
    %p211 = scmp.eq.s32.totalorder %s21, 1
    %p212 = por %p210, %p211
    %p214 = scmp.ne.s32.totalorder %s199, %s213
    %p215 = scmp.eq.s32.totalorder %s21, 0
    %p216 = por %p214, %p215
    %s218 = sadd.s32 %s217, 1
    %p221 = scmp.eq.s32.totalorder %s15, 1
    %p222 = scmp.ne.s32.totalorder %s217, %s219
    %p223 = scmp.eq.s32.totalorder %s15, 0
    %p224 = por %p222, %p223
    %p225 = scmp.ne.s32.totalorder %s217, %s219
    %p226 = scmp.eq.s32.totalorder %s20, 1
    %p227 = por %p225, %p226
    %p228 = scmp.ne.s32.totalorder %s219, %s220
    %p229 = scmp.eq.s32.totalorder %s20, 0
    %p230 = por %p228, %p229
    %p231 = scmp.ne.s32.totalorder %s219, %s220
    %p232 = scmp.eq.s32.totalorder %s21, 1
    %p233 = por %p231, %p232
    %p235 = scmp.ne.s32.totalorder %s220, %s234
    %p236 = scmp.eq.s32.totalorder %s21, 0
    %p237 = por %p235, %p236
    %p238 = scmp.le.s32.totalorder 1, %s15
    %p239 = scmp.lt.s32.totalorder %s15, 3
    %p240 = pnand %p238, %p239
    %p241 = pneg %p240
    // Predicated region
    $region9: #{pyramid_module_pallas.1} parent=5 // pred_check
      _
    $region10: #{pyramid_module_pallas.1} parent=5 // pred_check_branch
      %243 = sbr.rel (%p240) target = $region12
    $region11: #{pyramid_module_pallas.1} parent=5 // pred_region
      %s244 = ssub.s32 %s15, 1
      // Predicated region
      $region13: #{pyramid_module_pallas.1} parent=11 // pred_check
        %p245 = pneg %p62
      $region14: #{pyramid_module_pallas.1} parent=11 // pred_check_branch
        %247 = sbr.rel (%p245) target = $region16
      $region15: #{pyramid_module_pallas.1} parent=11 // pred_region
        _
      $region16: #{pyramid_module_pallas.1} parent=11 // pred_fallthru
        _
      // Predicated region
      $region17: #{pyramid_module_pallas.1} parent=11 // pred_check
        %p248 = pneg %p83
      $region18: #{pyramid_module_pallas.1} parent=11 // pred_check_branch
        %250 = sbr.rel (%p248) target = $region20
      $region19: #{pyramid_module_pallas.1} parent=11 // pred_region
        _
      $region20: #{pyramid_module_pallas.1} parent=11 // pred_fallthru
        _
      // Predicated region
      $region21: #{pyramid_module_pallas.1} parent=11 // pred_check
        %p251 = pneg %p104
      $region22: #{pyramid_module_pallas.1} parent=11 // pred_check_branch
        %253 = sbr.rel (%p251) target = $region24
      $region23: #{pyramid_module_pallas.1} parent=11 // pred_region
        _
      $region24: #{pyramid_module_pallas.1} parent=11 // pred_fallthru
        _
      // Predicated region
      $region25: #{pyramid_module_pallas.1} parent=11 // pred_check
        %p254 = pneg %p125
      $region26: #{pyramid_module_pallas.1} parent=11 // pred_check_branch
        %256 = sbr.rel (%p254) target = $region28
      $region27: #{pyramid_module_pallas.1} parent=11 // pred_region
        _
      $region28: #{pyramid_module_pallas.1} parent=11 // pred_fallthru
        _
      // Predicated region
      $region29: #{pyramid_module_pallas.1} parent=11 // pred_check
        %p257 = pneg %p146
      $region30: #{pyramid_module_pallas.1} parent=11 // pred_check_branch
        %259 = sbr.rel (%p257) target = $region32
      $region31: #{pyramid_module_pallas.1} parent=11 // pred_region
        _
      $region32: #{pyramid_module_pallas.1} parent=11 // pred_fallthru
        _
      // Predicated region
      $region33: #{pyramid_module_pallas.1} parent=11 // pred_check
        %p260 = pneg %p167
      $region34: #{pyramid_module_pallas.1} parent=11 // pred_check_branch
        %262 = sbr.rel (%p260) target = $region36
      $region35: #{pyramid_module_pallas.1} parent=11 // pred_region
        _
      $region36: #{pyramid_module_pallas.1} parent=11 // pred_fallthru
        _
      // Predicated region
      $region37: #{pyramid_module_pallas.1} parent=11 // pred_check
        %p263 = pneg %p188
      $region38: #{pyramid_module_pallas.1} parent=11 // pred_check_branch
        %265 = sbr.rel (%p263) target = $region40
      $region39: #{pyramid_module_pallas.1} parent=11 // pred_region
        _
      $region40: #{pyramid_module_pallas.1} parent=11 // pred_fallthru
        _
      // Predicated region
      $region41: #{pyramid_module_pallas.1} parent=11 // pred_check
        %p266 = pneg %p209
      $region42: #{pyramid_module_pallas.1} parent=11 // pred_check_branch
        %268 = sbr.rel (%p266) target = $region44
      $region43: #{pyramid_module_pallas.1} parent=11 // pred_region
        _
      $region44: #{pyramid_module_pallas.1} parent=11 // pred_fallthru
        _
    $region12: #{pyramid_module_pallas.1} parent=5 // pred_fallthru
      _
    %p269 = scmp.lt.s32.totalorder %s15, 2
    // Predicated region
    $region45: #{pyramid_module_pallas.1} parent=5 // pred_check
      %p270 = pneg %p269
    $region46: #{pyramid_module_pallas.1} parent=5 // pred_check_branch
      %272 = sbr.rel (%p270) target = $region48
    $region47: #{pyramid_module_pallas.1} parent=5 // pred_region
      // Predicated region
      $region49: #{pyramid_module_pallas.1} parent=47 // pred_check
        %p273 = pneg %p35
      $region50: #{pyramid_module_pallas.1} parent=47 // pred_check_branch
        %275 = sbr.rel (%p273) target = $region52
      $region51: #{pyramid_module_pallas.1} parent=47 // pred_region
        %p276 = scmp.lt.s32.totalorder %s15, 1
        %s277 = scalar_select %p276, %s15, 1
        %s278 = smul.addr %s277, 26
        %s279 = smul.addr %s278, 4
        %s280 = scalar_lea.vmem %s0, %s279
      $region52: #{pyramid_module_pallas.1} parent=47 // pred_fallthru
        _
    $region48: #{pyramid_module_pallas.1} parent=5 // pred_fallthru
      _
    %p281 = scmp.le.s32.totalorder 1, %s15
    %p282 = scmp.lt.s32.totalorder %s15, 3
    %p283 = pnand %p281, %p282
    %p284 = pneg %p283
    // Predicated region
    $region53: #{pyramid_module_pallas.1} parent=5 // pred_check
      _
    $region54: #{pyramid_module_pallas.1} parent=5 // pred_check_branch
      %286 = sbr.rel (%p283) target = $region56
    $region55: #{pyramid_module_pallas.1} parent=5 // pred_region
      %s287 = ssub.s32 %s15, 1
      %p288 = scmp.lt.s32.totalorder %s20, 1
      %s289 = scalar_select %p288, %s20, 1
      %s290 = smul.addr %s289, 26
      %s291 = smul.addr %s290, 4
      %s292 = scalar_lea.vmem %s0, %s291
      %p293 = pneg %p41
      %p294 = pneg %p38
      %p295 = pneg %p62
      %p296 = pneg %p59
      %p297 = pneg %p83
      %p298 = pneg %p80
      %p299 = pneg %p104
      %p300 = pneg %p101
      %p301 = pneg %p125
      %p302 = pneg %p122
      %p303 = pneg %p146
      %p304 = pneg %p143
      %p305 = pneg %p167
      %p306 = pneg %p164
      %p307 = pneg %p188
      %p308 = pneg %p185
      %p309 = pneg %p209
      %p310 = pneg %p206
      %p311 = pneg %p230
      %p312 = pneg %p227
      %p313 = scmp.lt.s32.totalorder %s20, 1
      %s314 = scalar_select %p313, %s20, 1
      %s315 = smul.addr %s314, 26
      %s316 = smul.addr %s315, 4
      %s317 = scalar_lea.vmem %s0, %s316
      %v319 = vld [vmem:[%s317] sm:$0xff]
      %v320 = vld [vmem:[%s317 + $0x8] sm:$0xff]
      %v321 = vld [vmem:[%s317 + $0x10] sm:$0xff]
      %v322 = vld [vmem:[%s317 + $0x18] sm:$0xff]
      %v323 = vld [vmem:[%s317 + $0x20] sm:$0xff]
      %v324 = vld [vmem:[%s317 + $0x28] sm:$0xff]
      %v325 = vld [vmem:[%s317 + $0x30] sm:$0xff]
      %v326 = vld [vmem:[%s317 + $0x38] sm:$0xff]
      %v327 = vld [vmem:[%s317 + $0x40] sm:$0xff]
      %v328 = vld [vmem:[%s317 + $0x48] sm:$0xff]
      %v329 = vld [vmem:[%s317 + $0x50] sm:$0xff]
      %v330 = vld [vmem:[%s317 + $0x58] sm:$0xff]
      %v331 = vld [vmem:[%s317 + $0x60] sm:$0x33]
      %v332 = vld [vmem:[%s1] sm:$0xf]
      %v333 = vld [vmem:[%s1 + $0x4] sm:$0x3]
      %v334 = vld [vmem:[%s2] sm:$0xff]
      %v335 = vld [vmem:[%s2 + $0x8] sm:$0xf]
      %337 = vset.pattern.permute.xlu0 0
      %338 = vperm.xlu0 %337, %v334
      %v339 = vpop.permute.xlu0 %338
      %342 = vset.pattern.permute.xlu0 0
      %343 = vperm.xlu0 %342, %v335
      %v344 = vpop.permute.xlu0 %343
      %v348 = vunpack.c.l.b16 %v332
      %v349 = vunpack.c.l.b16 %v333
      %v350 = vpack.c.b16 %v349, %v348
      %v364 = vunpack.c.l.b16 %v319
      %v365 = vunpack.c.h.b16 %v319
      %v366 = vunpack.c.l.b16 %v320
      %v367 = vunpack.c.h.b16 %v320
      %v368 = vunpack.c.l.b16 %v321
      %v369 = vunpack.c.h.b16 %v321
      %v370 = vunpack.c.l.b16 %v322
      %v371 = vunpack.c.h.b16 %v322
      %v372 = vunpack.c.l.b16 %v323
      %v373 = vunpack.c.h.b16 %v323
      %v374 = vunpack.c.l.b16 %v324
      %v375 = vunpack.c.h.b16 %v324
      %v376 = vunpack.c.l.b16 %v325
      %v377 = vunpack.c.h.b16 %v325
      %v378 = vunpack.c.l.b16 %v326
      %v379 = vunpack.c.h.b16 %v326
      %v380 = vunpack.c.l.b16 %v327
      %v381 = vunpack.c.h.b16 %v327
      %v382 = vunpack.c.l.b16 %v328
      %v383 = vunpack.c.h.b16 %v328
      %v384 = vunpack.c.l.b16 %v329
      %v385 = vunpack.c.h.b16 %v329
      %v386 = vunpack.c.l.b16 %v330
      %v387 = vunpack.c.h.b16 %v330
      %v388 = vunpack.c.l.b16 %v331
      %v389 = vunpack.c.h.b16 %v331
      %v390 = vpack.c.b16 %v366, %v364
      %v391 = vpack.c.b16 %v367, %v365
      %v392 = vpack.c.b16 %v370, %v368
      %v393 = vpack.c.b16 %v371, %v369
      %v394 = vpack.c.b16 %v374, %v372
      %v395 = vpack.c.b16 %v375, %v373
      %v396 = vpack.c.b16 %v378, %v376
      %v397 = vpack.c.b16 %v379, %v377
      %v398 = vpack.c.b16 %v382, %v380
      %v399 = vpack.c.b16 %v383, %v381
      %v400 = vpack.c.b16 %v386, %v384
      %v401 = vpack.c.b16 %v387, %v385
      %v402 = vpack.c.b16 %v388, %v388
      %v403 = vpack.c.b16 %v389, %v389
      %vm416 = vcmask 818176
      %v418 = vsel %vm416, %v350, 0
      %vm420 = vcmask 1041408
      %v422 = vsel %vm420, %v402, 0
      %v425 = vsel %vm420, %v403, 0
      %427 = vmatprep.subr.bf16.mxu0 %v391
      %428 = vmatpush1.bf16.msra.mxu0 %v390
      %429 = vmatprep.subr.bf16.mxu0 %v393
      %430 = vmatpush1.bf16.msra.mxu0 %v392
      %431 = vmatprep.subr.bf16.mxu0 %v395
      %432 = vmatpush1.bf16.msra.mxu0 %v394
      %433 = vmatprep.subr.bf16.mxu0 %v397
      %434 = vmatpush1.bf16.msra.mxu0 %v396
      %435 = vmatprep.subr.bf16.mxu0 %v399
      %436 = vmatpush1.bf16.msra.mxu0 %v398
      %437 = vmatprep.subr.bf16.mxu0 %v401
      %438 = vmatpush1.bf16.msra.mxu0 %v400
      %439 = vmatprep.subr.bf16.mxu0 %v425
      %440 = vmatpush1.bf16.msra.mxu0 %v422
      %441 = vmatprep.subr.bf16.mxu0 0
      %442 = vmatpush1.bf16.msra.mxu0 0
      %443 = vmatprep.subr.bf16.mxu0 0
      %444 = vmatpush1.bf16.msra.mxu0 0
      %445 = vmatprep.subr.bf16.mxu0 0
      %446 = vmatpush1.bf16.msra.mxu0 0
      %447 = vmatprep.subr.bf16.mxu0 0
      %448 = vmatpush1.bf16.msra.mxu0 0
      %449 = vmatprep.subr.bf16.mxu0 0
      %450 = vmatpush1.bf16.msra.mxu0 0
      %451 = vmatprep.subr.bf16.mxu0 0
      %452 = vmatpush1.bf16.msra.mxu0 0
      %453 = vmatprep.subr.bf16.mxu0 0
      %454 = vmatpush1.bf16.msra.mxu0 0
      %455 = vmatprep.subr.bf16.mxu0 0
      %456 = vmatpush1.bf16.msra.mxu0 0
      %457 = vmatprep.subr.bf16.mxu0 0
      %458 = vmatpush1.bf16.msra.mxu0 0
      %459 = vmatprep.mubr.bf16.mxu0 0
      %460 = vmatmul.mubr.bf16.gmra.mrb[0].mxu0 %v418
      %v461 = vpop.f32.mrb[0].mxu0
      %v462 = vadd.f32 %v339, %v461
      %v463 = vpop.f32.mrb[0].mxu0
      %v464 = vadd.f32 %v339, %v463
      %v465 = vpop.f32.mrb[0].mxu0
      %v466 = vadd.f32 %v344, %v465
      %v467 = vpop.f32.mrb[0].mxu0
      %v468 = vadd.f32 %v344, %v467
      %469 = vdwg.mxu0
      %v470 = vunpack.c.l.bf16 %v325
      %v471 = vunpack.c.h.bf16 %v325
      %vm472 = vcmask 1043456
      %v473 = vsel %vm472, %v470, 0.0
      %v474 = vsel %vm472, %v471, 0.0
      %v475 = vadd.f32 %v473, %v474
      %476 = vadd.xlane.f32.xlu0 %v475
      %v477 = vpop.xlane.xlu0 %476
      %v478 = vrcp.pop 256.0
      %v479 = vmul.f32 %v477, %v478
      %v480 = vld [vmem:[%s7] sm:$0xf]
      %v481 = vld [vmem:[%s8] sm:$0xf]
      %vm482 = vcmask 31744
      %v484 = vsel %vm482, %v480, 0
      %v487 = vsel %vm472, %v479, 0
      %489 = vmatprep.subr.mxu0 0.0
      %490 = vmatpush1.msra.mxu0 %v487
      %491 = vmatprep.subr.mxu0 0.0
      %492 = vmatpush1.msra.mxu0 0.0
      %493 = vmatprep.subr.mxu0 0.0
      %494 = vmatpush1.msra.mxu0 0.0
      %495 = vmatprep.subr.mxu0 0.0
      %496 = vmatpush1.msra.mxu0 0.0
      %497 = vmatprep.subr.mxu0 0.0
      %498 = vmatpush1.msra.mxu0 0.0
      %499 = vmatprep.subr.mxu0 0.0
      %500 = vmatpush1.msra.mxu0 0.0
      %501 = vmatprep.subr.mxu0 0.0
      %502 = vmatpush1.msra.mxu0 0.0
      %503 = vmatprep.subr.mxu0 0.0
      %504 = vmatpush1.msra.mxu0 0.0
      %505 = vmatprep.subr.mxu0 0.0
      %506 = vmatpush1.msra.mxu0 0.0
      %507 = vmatprep.subr.mxu0 0.0
      %508 = vmatpush1.msra.mxu0 0.0
      %509 = vmatprep.subr.mxu0 0.0
      %510 = vmatpush1.msra.mxu0 0.0
      %511 = vmatprep.subr.mxu0 0.0
      %512 = vmatpush1.msra.mxu0 0.0
      %513 = vmatprep.subr.mxu0 0.0
      %514 = vmatpush1.msra.mxu0 0.0
      %515 = vmatprep.subr.mxu0 0.0
      %516 = vmatpush1.msra.mxu0 0.0
      %517 = vmatprep.subr.mxu0 0.0
      %518 = vmatpush1.msra.mxu0 0.0
      %519 = vmatprep.subr.mxu0 0.0
      %520 = vmatpush1.msra.mxu0 0.0
      %521 = vmatprep.subr.mxu0 0.0
      %522 = vmatpush1.msra.mxu0 0.0
      %523 = vmatprep.subr.mxu0 0.0
      %524 = vmatpush1.msra.mxu0 0.0
      %525 = vmatprep.subr.mxu0 0.0
      %526 = vmatpush1.msra.mxu0 0.0
      %527 = vmatprep.subr.mxu0 0.0
      %528 = vmatpush1.msra.mxu0 0.0
      %529 = vmatprep.subr.mxu0 0.0
      %530 = vmatpush1.msra.mxu0 0.0
      %531 = vmatprep.subr.mxu0 0.0
      %532 = vmatpush1.msra.mxu0 0.0
      %533 = vmatprep.subr.mxu0 0.0
      %534 = vmatpush1.msra.mxu0 0.0
      %535 = vmatprep.subr.mxu0 0.0
      %536 = vmatpush1.msra.mxu0 0.0
      %537 = vmatprep.subr.mxu0 0.0
      %538 = vmatpush1.msra.mxu0 0.0
      %539 = vmatprep.subr.mxu0 0.0
      %540 = vmatpush1.msra.mxu0 0.0
      %541 = vmatprep.subr.mxu0 0.0
      %542 = vmatpush1.msra.mxu0 0.0
      %543 = vmatprep.subr.mxu0 0.0
      %544 = vmatpush1.msra.mxu0 0.0
      %545 = vmatprep.subr.mxu0 0.0
      %546 = vmatpush1.msra.mxu0 0.0
      %547 = vmatprep.subr.mxu0 0.0
      %548 = vmatpush1.msra.mxu0 0.0
      %549 = vmatprep.subr.mxu0 0.0
      %550 = vmatpush1.msra.mxu0 0.0
      %551 = vmatprep.subr.mxu0 0.0
      %552 = vmatpush1.msra.mxu0 0.0
      %553 = vmatprep.mubr.f32.mxu0 0.0
      %554 = vmatmul.mubr.f32.gmra.mrb[0].mxu0 %v484
      %v555 = vpop.f32.mrb[0].mxu0
      %v556 = vadd.f32 %v481, %v555
      %v557 = vpop.f32.mrb[0].mxu0
      %558 = vdwg.mxu0
      %560 = vset.pattern.permute.xlu0 0
      %561 = vperm.xlu0 %560, %v556
      %v562 = vpop.permute.xlu0 %561
      %v563 = vrot.slane %v562, 4
      %v565 = vsel %vm472, %v466, %v563
      %v566 = vsel %vm472, %v468, %v563
      %s567 = smul.u32 %s20, 4
      %s568 = smul.addr %s567, 8
      %s569 = scalar_lea.vmem %s9, %s568
      %570 = vst [vmem:[%s569] sm:$0xff] %v462
      %571 = vst [vmem:[%s569 + $0x8] sm:$0xff] %v464
      %572 = vst [vmem:[%s569 + $0x10] sm:$0xff] %v565
      %573 = vst [vmem:[%s569 + $0x18] sm:$0xff] %v566
      %p574 = scmp.eq.s32.totalorder %s20, 1
      // Predicated region
      $region57: #{pyramid_module_pallas.1} parent=55 // pred_check
        %p575 = pneg %p574
      $region58: #{pyramid_module_pallas.1} parent=55 // pred_check_branch
        %577 = sbr.rel (%p575) target = $region60
      $region59: #{pyramid_module_pallas.1} parent=55 // pred_region
        %v578 = vld [vmem:[%s9] sm:$0xf0]
        %v579 = vld [vmem:[%s9 + $0x8] sm:$0xf0]
        %v580 = vld [vmem:[%s9 + $0x20] sm:$0xf0]
        %v581 = vld [vmem:[%s9 + $0x28] sm:$0xf0]
        %vm582 = vcmask 1047556
        %v583 = vsel %vm582, %v578, 0.0
        %v584 = vsel %vm582, %v579, 0.0
        %v585 = vadd.f32 %v583, %v584
        %v586 = vsel %vm582, %v580, 0.0
        %v587 = vadd.f32 %v585, %v586
        %v588 = vsel %vm582, %v581, 0.0
        %v589 = vadd.f32 %v587, %v588
        %590 = vadd.xlane.f32.xlu0 %v589
        %v591 = vpop.xlane.xlu0 %590
        %v592 = vrcp.pop 512.0
        %v593 = vmul.f32 %v591, %v592
        %v594 = vsub.f32 %v578, %v593
        %v595 = vsub.f32 %v579, %v593
        %v596 = vsub.f32 %v580, %v593
        %v597 = vsub.f32 %v581, %v593
        %v598 = vmul.f32 %v594, %v594
        %v599 = vmul.f32 %v595, %v595
        %v600 = vmul.f32 %v596, %v596
        %v601 = vmul.f32 %v597, %v597
        %v602 = vsel %vm582, %v598, 0.0
        %v603 = vsel %vm582, %v599, 0.0
        %v604 = vadd.f32 %v602, %v603
        %v605 = vsel %vm582, %v600, 0.0
        %v606 = vadd.f32 %v604, %v605
        %v607 = vsel %vm582, %v601, 0.0
        %v608 = vadd.f32 %v606, %v607
        %609 = vadd.xlane.f32.xlu0 %v608
        %v610 = vpop.xlane.xlu0 %609
        %v611 = vmul.f32 %v610, %v592
        %v612 = vld [vmem:[%s3] sm:$0xf]
        %v613 = vadd.f32 %v611, 1e-05
        %v614 = vrsqrt.pop %v613
        %v616 = vrot.slane %v614, 4
        %v618 = vmul.f32 %v612, %v616
        %v619 = vld [vmem:[%s4] sm:$0xf]
        %v621 = vrot.slane %v618, 4
        %v623 = vmul.f32 %v593, %v621
        %v625 = vrot.slane %v623, 4
        %v627 = vsub.f32 %v619, %v625
        %628 = vset.pattern.permute.xlu0 0
        %629 = vperm.xlu0 %628, %v618
        %v630 = vpop.permute.xlu0 %629
        %v631 = vrot.slane %v630, 4
        %v633 = vmul.f32 %v578, %v631
        %v634 = vmul.f32 %v579, %v631
        %v635 = vmul.f32 %v580, %v631
        %v636 = vmul.f32 %v581, %v631
        %638 = vset.pattern.permute.xlu0 0
        %639 = vperm.xlu0 %638, %v627
        %v640 = vpop.permute.xlu0 %639
        %v641 = vrot.slane %v640, 4
        %v643 = vadd.f32 %v633, %v641
        %v644 = vadd.f32 %v634, %v641
        %v645 = vadd.f32 %v635, %v641
        %v646 = vadd.f32 %v636, %v641
        %vm647 = vcmp.ge.f32.partialorder %v643, 0.0
        %vm648 = vcmp.ge.f32.partialorder %v644, 0.0
        %vm649 = vcmp.ge.f32.partialorder %v645, 0.0
        %vm650 = vcmp.ge.f32.partialorder %v646, 0.0
        %v651 = vmul.f32 %v643, 0.01
        %v652 = vmul.f32 %v644, 0.01
        %v653 = vmul.f32 %v645, 0.01
        %v654 = vmul.f32 %v646, 0.01
        %v655 = vsel %vm647, %v643, %v651
        %v656 = vsel %vm648, %v644, %v652
        %v657 = vsel %vm649, %v645, %v653
        %v658 = vsel %vm650, %v646, %v654
        %659 = vst [vmem:[%s9] sm:$0xf0] %v655
        %660 = vst [vmem:[%s9 + $0x8] sm:$0xf0] %v656
        %661 = vst [vmem:[%s9 + $0x20] sm:$0xf0] %v657
        %662 = vst [vmem:[%s9 + $0x28] sm:$0xf0] %v658
        %v663 = vld [vmem:[%s9 + $0x10] sm:$0xf]
        %v664 = vld [vmem:[%s9 + $0x18] sm:$0xf]
        %v665 = vld [vmem:[%s9 + $0x30] sm:$0xf]
        %v666 = vld [vmem:[%s9 + $0x38] sm:$0xf]
        %v667 = vsel %vm472, %v663, 0.0
        %v668 = vsel %vm472, %v664, 0.0
        %v669 = vadd.f32 %v667, %v668
        %v670 = vsel %vm472, %v665, 0.0
        %v671 = vadd.f32 %v669, %v670
        %v672 = vsel %vm472, %v666, 0.0
        %v673 = vadd.f32 %v671, %v672
        %674 = vadd.xlane.f32.xlu0 %v673
        %v675 = vpop.xlane.xlu0 %674
        %v676 = vmul.f32 %v675, %v592
        %v677 = vsub.f32 %v663, %v676
        %v678 = vsub.f32 %v664, %v676
        %v679 = vsub.f32 %v665, %v676
        %v680 = vsub.f32 %v666, %v676
        %v681 = vmul.f32 %v677, %v677
        %v682 = vmul.f32 %v678, %v678
        %v683 = vmul.f32 %v679, %v679
        %v684 = vmul.f32 %v680, %v680
        %v685 = vsel %vm472, %v681, 0.0
        %v686 = vsel %vm472, %v682, 0.0
        %v687 = vadd.f32 %v685, %v686
        %v688 = vsel %vm472, %v683, 0.0
        %v689 = vadd.f32 %v687, %v688
        %v690 = vsel %vm472, %v684, 0.0
        %v691 = vadd.f32 %v689, %v690
        %692 = vadd.xlane.f32.xlu0 %v691
        %v693 = vpop.xlane.xlu0 %692
        %v694 = vmul.f32 %v693, %v592
        %v695 = vld [vmem:[%s5] sm:$0xf]
        %v696 = vadd.f32 %v694, 1e-05
        %v697 = vrsqrt.pop %v696
        %v698 = vmul.f32 %v695, %v697
        %v699 = vld [vmem:[%s6] sm:$0xf]
        %v700 = vmul.f32 %v676, %v698
        %v701 = vsub.f32 %v699, %v700
        %703 = vset.pattern.permute.xlu0 0
        %704 = vperm.xlu0 %703, %v698
        %v705 = vpop.permute.xlu0 %704
        %v707 = vmul.f32 %v663, %v705
        %v708 = vmul.f32 %v664, %v705
        %v709 = vmul.f32 %v665, %v705
        %v710 = vmul.f32 %v666, %v705
        %712 = vset.pattern.permute.xlu0 0
        %713 = vperm.xlu0 %712, %v701
        %v714 = vpop.permute.xlu0 %713
        %v716 = vadd.f32 %v707, %v714
        %v717 = vadd.f32 %v708, %v714
        %v718 = vadd.f32 %v709, %v714
        %v719 = vadd.f32 %v710, %v714
        %vm720 = vcmp.ge.f32.partialorder %v716, 0.0
        %vm721 = vcmp.ge.f32.partialorder %v717, 0.0
        %vm722 = vcmp.ge.f32.partialorder %v718, 0.0
        %vm723 = vcmp.ge.f32.partialorder %v719, 0.0
        %v724 = vmul.f32 %v716, 0.01
        %v725 = vmul.f32 %v717, 0.01
        %v726 = vmul.f32 %v718, 0.01
        %v727 = vmul.f32 %v719, 0.01
        %v728 = vsel %vm720, %v716, %v724
        %v729 = vsel %vm721, %v717, %v725
        %v730 = vsel %vm722, %v718, %v726
        %v731 = vsel %vm723, %v719, %v727
        %732 = vst [vmem:[%s9 + $0x10] sm:$0xf] %v728
        %733 = vst [vmem:[%s9 + $0x18] sm:$0xf] %v729
        %734 = vst [vmem:[%s9 + $0x30] sm:$0xf] %v730
        %735 = vst [vmem:[%s9 + $0x38] sm:$0xf] %v731
      $region60: #{pyramid_module_pallas.1} parent=55 // pred_fallthru
        _
      // Predicated region
      $region61: #{pyramid_module_pallas.1} parent=55 // pred_check
        %p736 = pneg %p227
      $region62: #{pyramid_module_pallas.1} parent=55 // pred_check_branch
        %738 = sbr.rel (%p736) target = $region64
      $region63: #{pyramid_module_pallas.1} parent=55 // pred_region
        _
      $region64: #{pyramid_module_pallas.1} parent=55 // pred_fallthru
        _
      // Predicated region
      $region65: #{pyramid_module_pallas.1} parent=55 // pred_check
        %p739 = pneg %p227
      $region66: #{pyramid_module_pallas.1} parent=55 // pred_check_branch
        %741 = sbr.rel (%p739) target = $region68
      $region67: #{pyramid_module_pallas.1} parent=55 // pred_region
        _
      $region68: #{pyramid_module_pallas.1} parent=55 // pred_fallthru
        _
    $region56: #{pyramid_module_pallas.1} parent=5 // pred_fallthru
      _
    %p742 = scmp.le.s32.totalorder 2, %s15
    // Predicated region
    $region69: #{pyramid_module_pallas.1} parent=5 // pred_check
      %p743 = pneg %p742
    $region70: #{pyramid_module_pallas.1} parent=5 // pred_check_branch
      %745 = sbr.rel (%p743) target = $region72
    $region71: #{pyramid_module_pallas.1} parent=5 // pred_region
      %s746 = ssub.s32 %s15, 2
    $region72: #{pyramid_module_pallas.1} parent=5 // pred_fallthru
      _
  $region6: #{pyramid_module_pallas.1} parent=0 // loop_footer
    %s19 = sadd.s32 1, %s15
  $region7: #{pyramid_module_pallas.1} parent=0 // loop_footer_branch
    %14 = sbr.rel target = $region3
  $region8: #{pyramid_module_pallas.1} parent=0 // loop_exit
    _

</llo_original>
